<compile_context>
chip_gen: v5e
topology: v5e:2x2
jax: 0.10.0
libtpu: 0.0.40
codegen_flags: <defaults>
</compile_context>

<pallas_src>
import jax
import jax.numpy as jnp
import numpy as np
from jax.experimental import pallas as pl
from jax.experimental.pallas import tpu as pltpu


# Fused feature layout along the K = 128 contraction axis:
#   [  0, 10)  : eluent RBF              (10 centers)
#   [ 10,110)  : grain_radian RBF        (100 centers)
#   [110,117)  : silica_surface one-hot  (7 rows, bias folded in)
#   [117,128)  : replace_basis one-hot   (11 rows)
_N_RBF0 = 10
_N_RBF1 = 100
_N_EMB0 = 7
_N_EMB1 = 11
_K = _N_RBF0 + _N_RBF1 + _N_EMB0 + _N_EMB1      # == 128, exactly one MXU pass
_OH0_OFF = _N_RBF0 + _N_RBF1                     # 110
_OH1_OFF = _OH0_OFF + _N_EMB0                    # 117


def condition_embedding_kernel(
    cond_ref,     # (TB, 4)   f32 : [silica_idx, eluent_val, replace_idx, grain_val]
    scale_ref,    # (1, 128)  f32 : per-column sqrt(gamma)        (0 in one-hot cols)
    center_ref,   # (1, 128)  f32 : per-column sqrt(gamma)*center (0 in one-hot cols)
    w_ref,        # (128, Dp) f32 : concat([w_eluent, w_grain, e_silica + bias, e_basis])
    out_ref,      # (TB, Dp)  f32
):
    B = cond_ref.shape[0]
    col = jax.lax.broadcasted_iota(jnp.int32, (B, _K), 1)

    # Split the packed condition block inside the kernel (static lane slices).
    x0 = cond_ref[:, 1:2]                                  # eluent value       (B, 1)
    x1 = cond_ref[:, 3:4]                                  # grain_radian value (B, 1)
    i0 = jnp.round(cond_ref[:, 0:1]).astype(jnp.int32)     # silica_surface idx (B, 1)
    i1 = jnp.round(cond_ref[:, 2:3]).astype(jnp.int32)     # replace_basis idx  (B, 1)

    # RBF segment (cols [0, 110)): exp(-(sqrt(g)*x - sqrt(g)*c)^2) == exp(-g*(x-c)^2)
    x_sel = jnp.where(col < _N_RBF0, x0, x1)                       # (B, 128)
    d = scale_ref[...] * x_sel - center_ref[...]                    # (B, 128)
    rbf = jnp.exp(-(d * d))

    # One-hot segment (cols [110, 128)): embedding lookup as one-hot matmul.
    tgt = jnp.where(col < _OH1_OFF, i0 + _OH0_OFF, i1 + _OH1_OFF)   # (B, 128)
    oh = (col == tgt).astype(jnp.float32)

    feat = jnp.where(col < _OH0_OFF, rbf, oh)                       # (B, 128)

    # Single fused MXU matmul (bias already folded into the silica rows of w).
    out_ref[...] = jnp.dot(feat, w_ref[...], preferred_element_type=jnp.float32)


def _round_up(x, m):
    return ((x + m - 1) // m) * m


def make_params(embed_dim, key):
    """Deterministic synthetic parameters matching the PyTorch __init__ shapes."""
    k = jax.random.split(key, 6)
    # RBF params (defaults from the module)
    c0 = jnp.arange(0.0, 1.0, 0.1, dtype=jnp.float32).reshape(1, -1)     # (1, 10)
    g0 = jnp.array([[10.0]], dtype=jnp.float32)
    c1 = jnp.arange(0.0, 10.0, 0.1, dtype=jnp.float32).reshape(1, -1)    # (1, 100)
    g1 = jnp.array([[10.0]], dtype=jnp.float32)
    # Linear layers: stored as (in, out) so y = x @ W + b
    w0 = 0.1 * jax.random.normal(k[0], (10, embed_dim), jnp.float32)
    b0 = 0.1 * jax.random.normal(k[1], (1, embed_dim), jnp.float32)
    w1 = 0.1 * jax.random.normal(k[2], (100, embed_dim), jnp.float32)
    b1 = 0.1 * jax.random.normal(k[3], (1, embed_dim), jnp.float32)
    # Embedding tables: silica_surface -> 2+5=7 rows, replace_basis -> 6+5=11 rows
    e0 = 0.1 * jax.random.normal(k[4], (7, embed_dim), jnp.float32)
    e1 = 0.1 * jax.random.normal(k[5], (11, embed_dim), jnp.float32)
    return dict(c0=c0, g0=g0, w0=w0, b0=b0, c1=c1, g1=g1, w1=w1, b1=b1,
                e0=e0, e1=e1)


def pack_params(params, embed_dim):
    """One-time packing: fold gammas into centers, fold (b0+b1) into the silica
    embedding rows, concat all weights into (128, Dp) with Dp lane-dense."""
    Dp = max(128, _round_up(embed_dim, 128))
    sg0 = jnp.sqrt(params['g0'][0, 0])
    sg1 = jnp.sqrt(params['g1'][0, 0])
    zeros_tail = jnp.zeros((1, _N_EMB0 + _N_EMB1), jnp.float32)
    scale_cat = jnp.concatenate([
        jnp.full((1, _N_RBF0), sg0, jnp.float32),
        jnp.full((1, _N_RBF1), sg1, jnp.float32),
        zeros_tail], axis=1)                                            # (1, 128)
    center_cat = jnp.concatenate([
        sg0 * params['c0'], sg1 * params['c1'], zeros_tail], axis=1)     # (1, 128)
    # Exactly one silica one-hot column fires per (valid) row -> the summed bias
    # rides through the matmul for free.
    bias = params['b0'] + params['b1']                                   # (1, D)
    e0_biased = params['e0'] + bias                                      # (7, D)
    w_cat = jnp.concatenate(
        [params['w0'], params['w1'], e0_biased, params['e1']], axis=0)   # (128, D)
    w_cat = jnp.zeros((_K, Dp), jnp.float32).at[:, :embed_dim].set(w_cat)
    return dict(scale_cat=scale_cat, center_cat=center_cat, w_cat=w_cat)


def _select_tb(B, Dp):
    """Batch tile: one big block on single-TC chips (v5e/v6e), >=2 blocks on
    dual-TC v7x, capped by a VMEM budget that fits every generation."""
    # Dominant VMEM term is the double-buffered output tile: 2 * TB * Dp * 4 bytes.
    # Keep it under ~14 MiB so the whole kernel stays well inside v7x's 64 MiB
    # physical / 32 MiB default-scoped VMEM.
    tb_cap = max(8, (((14 << 20) // (2 * Dp * 4)) // 8) * 8)
    try:
        two_tc = "v7" in jax.devices()[0].device_kind.lower()
    except Exception:  # pragma: no cover - defensive
        two_tc = False
    min_steps = 2 if (two_tc and B > 16) else 1       # keep both v7x TCs busy
    tb = _round_up(max(pl.cdiv(B, min_steps), 1), 8)
    return max(8, min(tb, tb_cap))


def condition_embedding(condition, packed, embed_dim):
    """Pallas-backed forward pass.  condition: (B, 4) float32."""
    B = condition.shape[0]
    Dp = packed['w_cat'].shape[1]
    TB = _select_tb(B, Dp)
    grid = (pl.cdiv(B, TB),)

    # Explicit VMEM budget (out + cond double buffers, params, slack).
    vmem_bytes = (2 * TB * Dp * 4 + 2 * TB * 128 * 4
                  + 2 * _K * Dp * 4 + 4 * 2 * _K * 4 + (4 << 20))
    vmem_bytes = int(min(max(vmem_bytes, 16 << 20), 30 << 20))

    out = pl.pallas_call(
        condition_embedding_kernel,
        out_shape=jax.ShapeDtypeStruct((B, Dp), jnp.float32),
        grid=grid,
        in_specs=[
            pl.BlockSpec((TB, 4), lambda i: (i, 0)),     # condition: tiled over batch
            pl.BlockSpec((1, _K), lambda i: (0, 0)),     # scale_cat: constant index
            pl.BlockSpec((1, _K), lambda i: (0, 0)),     # center_cat: constant index
            pl.BlockSpec((_K, Dp), lambda i: (0, 0)),    # w_cat: constant index
        ],
        out_specs=pl.BlockSpec((TB, Dp), lambda i: (i, 0)),
        compiler_params=pltpu.CompilerParams(
            dimension_semantics=("parallel",),           # megacore batch split (v7x)
            vmem_limit_bytes=vmem_bytes),
    )(jnp.asarray(condition, jnp.float32),
      packed['scale_cat'], packed['center_cat'], packed['w_cat'])

    # Only the lane-padding slice remains; no batch pad / batch slice needed.
    if Dp != embed_dim:
        out = out[:, :embed_dim]
    return out


def condition_embedding_ref(condition, params):
    """Pure-JAX reference mirroring the PyTorch forward exactly."""
    condition = condition.astype(jnp.float32)
    x0 = condition[:, 1:2]
    rbf0 = jnp.exp(-params['g0'][0, 0] * jnp.square(x0 - params['c0']))
    out = rbf0 @ params['w0'] + params['b0']
    x1 = condition[:, 3:4]
    rbf1 = jnp.exp(-params['g1'][0, 0] * jnp.square(x1 - params['c1']))
    out = out + rbf1 @ params['w1'] + params['b1']
    idx0 = condition[:, 0].astype(jnp.int32)
    out = out + params['e0'][idx0]
    idx1 = condition[:, 2].astype(jnp.int32)
    out = out + params['e1'][idx1]
    return out


if __name__ == "__main__":
    B = 2
    embed_dim = 32
    key = jax.random.PRNGKey(0)
    kp, kc0, kc1, ki0, ki1 = jax.random.split(key, 5)

    params = make_params(embed_dim, kp)
    packed = pack_params(params, embed_dim)

    # Build a (B, 4) condition tensor: [silica_idx, eluent, replace_idx, grain_radian]
    silica_idx = jax.random.randint(ki0, (B,), 0, 7).astype(jnp.float32)
    eluent_val = jax.random.uniform(kc0, (B,), jnp.float32, 0.0, 1.0)
    replace_idx = jax.random.randint(ki1, (B,), 0, 11).astype(jnp.float32)
    grain_val = jax.random.uniform(kc1, (B,), jnp.float32, 0.0, 10.0)
    condition = jnp.stack([silica_idx, eluent_val, replace_idx, grain_val], axis=1)

    out = condition_embedding(condition, packed, embed_dim)
    out = jax.block_until_ready(out)

    ref = condition_embedding_ref(condition, params)
    np.testing.assert_allclose(np.asarray(out), np.asarray(ref),
                               rtol=1e-5, atol=1e-5)
    print("KERNEL_OK")
</pallas_src>

<mosaic_0001>
module attributes {stable_mosaic.version = 11 : i64} {
  func.func @condition_embedding_kernel(%arg0: i32, %arg1: memref<8x4xf32, #tpu.memory_space<vmem>>, %arg2: memref<1x128xf32, #tpu.memory_space<vmem>>, %arg3: memref<1x128xf32, #tpu.memory_space<vmem>>, %arg4: memref<128x128xf32, #tpu.memory_space<vmem>>, %arg5: memref<8x128xf32, #tpu.memory_space<vmem>>) attributes {dimension_semantics = [#tpu.dimension_semantics<parallel>], iteration_bounds = array<i64: 1>, scalar_prefetch = 0 : i64, scratch_operands = 0 : i64, tpu.core_type = #tpu.core_type<tc>, window_params = [{transform_indices = @transform_0, window_bounds = array<i64: 8, 4>}, {pipeline_mode = #tpu.pipeline_mode<synchronous>, transform_indices = @transform_1, window_bounds = array<i64: 1, 128>}, {pipeline_mode = #tpu.pipeline_mode<synchronous>, transform_indices = @transform_2, window_bounds = array<i64: 1, 128>}, {pipeline_mode = #tpu.pipeline_mode<synchronous>, transform_indices = @transform_3, window_bounds = array<i64: 128, 128>}, {transform_indices = @transform_4, window_bounds = array<i64: 8, 128>}]} {
    %0 = tpu.iota {dimensions = array<i32: 1>} : vector<8x128xi32>
    %c0 = arith.constant 0 : index
    %c1 = arith.constant 1 : index
    %1 = vector.load %arg1[%c0, %c1] : memref<8x4xf32, #tpu.memory_space<vmem>>, vector<8x1xf32>
    %c0_0 = arith.constant 0 : index
    %c3 = arith.constant 3 : index
    %2 = vector.load %arg1[%c0_0, %c3] : memref<8x4xf32, #tpu.memory_space<vmem>>, vector<8x1xf32>
    %c0_1 = arith.constant 0 : index
    %c0_2 = arith.constant 0 : index
    %3 = vector.load %arg1[%c0_1, %c0_2] : memref<8x4xf32, #tpu.memory_space<vmem>>, vector<8x1xf32>
    %4 = math.roundeven %3 : vector<8x1xf32>
    %5 = arith.fptosi %4 : vector<8x1xf32> to vector<8x1xi32>
    %c0_3 = arith.constant 0 : index
    %c2 = arith.constant 2 : index
    %6 = vector.load %arg1[%c0_3, %c2] : memref<8x4xf32, #tpu.memory_space<vmem>>, vector<8x1xf32>
    %7 = math.roundeven %6 : vector<8x1xf32>
    %8 = arith.fptosi %7 : vector<8x1xf32> to vector<8x1xi32>
    %c10_i32 = arith.constant 10 : i32
    %9 = vector.broadcast %c10_i32 : i32 to vector<8x128xi32>
    %10 = arith.cmpi slt, %0, %9 : vector<8x128xi32>
    %11 = vector.shape_cast %1 : vector<8x1xf32> to vector<8x1xf32>
    %12 = vector.broadcast %11 : vector<8x1xf32> to vector<8x128xf32>
    %13 = vector.shape_cast %2 : vector<8x1xf32> to vector<8x1xf32>
    %14 = vector.broadcast %13 : vector<8x1xf32> to vector<8x128xf32>
    %15 = arith.select %10, %12, %14 : vector<8x128xi1>, vector<8x128xf32>
    %c0_4 = arith.constant 0 : index
    %c0_5 = arith.constant 0 : index
    %16 = vector.load %arg2[%c0_4, %c0_5] : memref<1x128xf32, #tpu.memory_space<vmem>>, vector<1x128xf32>
    %17 = vector.broadcast %16 : vector<1x128xf32> to vector<8x128xf32>
    %18 = arith.mulf %17, %15 : vector<8x128xf32>
    %c0_6 = arith.constant 0 : index
    %c0_7 = arith.constant 0 : index
    %19 = vector.load %arg3[%c0_6, %c0_7] : memref<1x128xf32, #tpu.memory_space<vmem>>, vector<1x128xf32>
    %20 = vector.broadcast %19 : vector<1x128xf32> to vector<8x128xf32>
    %21 = arith.subf %18, %20 : vector<8x128xf32>
    %22 = arith.mulf %21, %21 : vector<8x128xf32>
    %cst = arith.constant 0.000000e+00 : f32
    %23 = vector.broadcast %cst : f32 to vector<8x128xf32>
    %24 = arith.subf %23, %22 : vector<8x128xf32>
    %25 = math.exp %24 : vector<8x128xf32>
    %c117_i32 = arith.constant 117 : i32
    %26 = vector.broadcast %c117_i32 : i32 to vector<8x128xi32>
    %27 = arith.cmpi slt, %0, %26 : vector<8x128xi32>
    %c110_i32 = arith.constant 110 : i32
    %28 = vector.broadcast %c110_i32 : i32 to vector<8x1xi32>
    %29 = arith.addi %5, %28 : vector<8x1xi32>
    %c117_i32_8 = arith.constant 117 : i32
    %30 = vector.broadcast %c117_i32_8 : i32 to vector<8x1xi32>
    %31 = arith.addi %8, %30 : vector<8x1xi32>
    %32 = vector.shape_cast %29 : vector<8x1xi32> to vector<8x1xi32>
    %33 = vector.broadcast %32 : vector<8x1xi32> to vector<8x128xi32>
    %34 = vector.shape_cast %31 : vector<8x1xi32> to vector<8x1xi32>
    %35 = vector.broadcast %34 : vector<8x1xi32> to vector<8x128xi32>
    %36 = arith.select %27, %33, %35 : vector<8x128xi1>, vector<8x128xi32>
    %37 = arith.cmpi eq, %0, %36 : vector<8x128xi32>
    %38 = arith.extui %37 : vector<8x128xi1> to vector<8x128xi32>
    %39 = arith.sitofp %38 : vector<8x128xi32> to vector<8x128xf32>
    %c110_i32_9 = arith.constant 110 : i32
    %40 = vector.broadcast %c110_i32_9 : i32 to vector<8x128xi32>
    %41 = arith.cmpi slt, %0, %40 : vector<8x128xi32>
    %42 = arith.select %41, %25, %39 : vector<8x128xi1>, vector<8x128xf32>
    %c0_10 = arith.constant 0 : index
    %c0_11 = arith.constant 0 : index
    %43 = vector.load %arg4[%c0_10, %c0_11] : memref<128x128xf32, #tpu.memory_space<vmem>>, vector<128x128xf32>
    %cst_12 = arith.constant dense<0.000000e+00> : vector<8x128xf32>
    %44 = tpu.matmul %42, %43, %cst_12 {dimension_numbers = #tpu.dot_dimension_numbers<[1], [0], [0], [1], [0, 0, 1, 1], [], []>} : vector<8x128xf32>, vector<128x128xf32>, vector<8x128xf32> -> vector<8x128xf32>
    %c0_13 = arith.constant 0 : index
    %c0_14 = arith.constant 0 : index
    %45 = vector.load %arg5[%c0_13, %c0_14] : memref<8x128xf32, #tpu.memory_space<vmem>>, vector<8x128xf32>
    tpu.vector_store %arg5[%c0_13, %c0_14], %44 {strides = array<i32>} : memref<8x128xf32, #tpu.memory_space<vmem>>, vector<8x128xf32>,
    return
  }
  func.func @transform_0(%arg0: i32) -> (i32, i32) {
    %c0_i32 = arith.constant 0 : i32
    %c0_i32_0 = arith.constant 0 : i32
    return %arg0, %c0_i32 : i32, i32
  }
  func.func @transform_1(%arg0: i32) -> (i32, i32) {
    %c0_i32 = arith.constant 0 : i32
    %c0_i32_0 = arith.constant 0 : i32
    %c0_i32_1 = arith.constant 0 : i32
    return %c0_i32, %c0_i32_0 : i32, i32
  }
  func.func @transform_2(%arg0: i32) -> (i32, i32) {
    %c0_i32 = arith.constant 0 : i32
    %c0_i32_0 = arith.constant 0 : i32
    %c0_i32_1 = arith.constant 0 : i32
    return %c0_i32, %c0_i32_0 : i32, i32
  }
  func.func @transform_3(%arg0: i32) -> (i32, i32) {
    %c0_i32 = arith.constant 0 : i32
    %c0_i32_0 = arith.constant 0 : i32
    %c0_i32_1 = arith.constant 0 : i32
    return %c0_i32, %c0_i32_0 : i32, i32
  }
  func.func @transform_4(%arg0: i32) -> (i32, i32) {
    %c0_i32 = arith.constant 0 : i32
    %c0_i32_0 = arith.constant 0 : i32
    return %arg0, %c0_i32 : i32, i32
  }
}

</mosaic_0001>

<llo_original>
// kernel: tpu_custom_call.1
$region0: #{tpu_custom_call.1}
  #allocation0 [shape = 'u32[]', space=smem, size = 0x4, offset = 0x4, fixed_abs, tag = 'smem constant byte address 0x4 - core index']
  #allocation1 [shape = 'u32[72,128]{1,0:T(1,128)}', space=vmem, size = 0x9000, scoped, tag = 'internal scratch']
  %s0 = inlined_call_operand.hbm [shape: f32[2,4], index: 0, kind: input, shape index: {}]
  %s1 = inlined_call_operand.hbm [shape: f32[1,128], index: 1, kind: input, shape index: {}]
  %s2 = inlined_call_operand.vmem [shape: f32[1,128], index: 2, kind: input, shape index: {}]
  %s3 = inlined_call_operand.hbm [shape: f32[128,128], index: 3, kind: input, shape index: {}]
  %s4 = inlined_call_operand.hbm [shape: f32[2,128], index: 4, kind: output, shape index: {}]
  %s5 = sld [smem:[#allocation0]]
  $region38: #{tpu_custom_call.1} parent=0
    _
  %s7 = ssub.s32 1, %s5
  %s8 = scalar_select 0, %s7, %s5
  $region1: #{tpu_custom_call.1} parent=0
    #allocation2 [shape = 'u8[4096]{0}', space=vmem, size = 0x1000, scoped, tag = 'input window, operand 0, single buffered']
    #allocation3 [shape = 's32[1]{0}', space=sflag, size = 0x4, scoped, tag = 'scoped memory for tpu_custom_call.1']
    #allocation4 [shape = 's32[1]{0}', space=sflag, size = 0x4, scoped, tag = 'scoped memory for tpu_custom_call.1']
    #allocation5 [shape = 'u8[512]{0}', space=vmem, size = 0x400, scoped, tag = 'input window, operand 1, single buffered']
    #allocation6 [shape = 's32[1]{0}', space=sflag, size = 0x4, scoped, tag = 'scoped memory for tpu_custom_call.1']
    #allocation7 [shape = 'u8[65536]{0}', space=vmem, size = 0x10000, scoped, tag = 'input window, operand 3, single buffered']
    #allocation8 [shape = 'u8[4096]{0}', space=vmem, size = 0x1000, scoped, tag = 'output window, operand 0, single buffered']
    %9 = vsyncpa [#allocation3], 0
    %10 = vsyncpa [#allocation6], 0
    %11 = vsyncpa [#allocation4], 0
    // Predicated region
    $region2: #{tpu_custom_call.1} parent=1 // pred_check
      _
    $region3: #{tpu_custom_call.1} parent=1 // pred_check_branch
      %13 = sbr.rel (0) target = $region5
    $region4: #{tpu_custom_call.1} parent=1 // pred_region
      %15 = vsyncadd [#allocation3], 96
      %s16 = sshll.u32 %s0, 4
      %s17 = int_to_ptr.hbm [resolvable:$true] %s16
      %s18 = sshll.u32 [#allocation2], 4
      %s19 = int_to_ptr.vmem [resolvable:$true] %s18
      %24 = dma.hbm_to_vmem [thread:$0]  %s17, 32, %s19, [#allocation3], 32, 32, 2
    $region5: #{tpu_custom_call.1} parent=1 // pred_fallthru
      _
    // Predicated region
    $region6: #{tpu_custom_call.1} parent=1 // pred_check
      _
    $region7: #{tpu_custom_call.1} parent=1 // pred_check_branch
      %26 = sbr.rel (0) target = $region9
    $region8: #{tpu_custom_call.1} parent=1 // pred_region
      %28 = vsyncadd [#allocation6], 0
      %s30 = sshll.u32 %s1, 4
      %s31 = int_to_ptr.hbm [resolvable:$true] %s30
      %s32 = sshll.u32 [#allocation5], 4
      %s33 = int_to_ptr.vmem [resolvable:$true] %s32
      %35 = dma.hbm_to_vmem [thread:$0]  %s31, 16, %s33, [#allocation6]
    $region9: #{tpu_custom_call.1} parent=1 // pred_fallthru
      _
    // Predicated region
    $region10: #{tpu_custom_call.1} parent=1 // pred_check
      _
    $region11: #{tpu_custom_call.1} parent=1 // pred_check_branch
      %37 = sbr.rel (0) target = $region13
    $region12: #{tpu_custom_call.1} parent=1 // pred_region
      _
    $region13: #{tpu_custom_call.1} parent=1 // pred_fallthru
      _
    // Predicated region
    $region14: #{tpu_custom_call.1} parent=1 // pred_check
      _
    $region15: #{tpu_custom_call.1} parent=1 // pred_check_branch
      %39 = sbr.rel (0) target = $region17
    $region16: #{tpu_custom_call.1} parent=1 // pred_region
      %41 = vsyncadd [#allocation6], 0
      %s42 = sshll.u32 %s3, 4
      %s43 = int_to_ptr.hbm [resolvable:$true] %s42
      %s44 = sshll.u32 [#allocation7], 4
      %s45 = int_to_ptr.vmem [resolvable:$true] %s44
      %50 = dma.hbm_to_vmem [thread:$0]  %s43, 2048, %s45, [#allocation6], 128, 128, 8
    $region17: #{tpu_custom_call.1} parent=1 // pred_fallthru
      _
    // Predicated region
    $region18: #{tpu_custom_call.1} parent=1 // pred_check
      _
    $region19: #{tpu_custom_call.1} parent=1 // pred_check_branch
      %52 = sbr.rel (0) target = $region21
    $region20: #{tpu_custom_call.1} parent=1 // pred_region
      %54 = dma.done [#allocation3], 128
    $region21: #{tpu_custom_call.1} parent=1 // pred_fallthru
      _
    // Predicated region
    $region22: #{tpu_custom_call.1} parent=1 // pred_check
      _
    $region23: #{tpu_custom_call.1} parent=1 // pred_check_branch
      %56 = sbr.rel (0) target = $region25
    $region24: #{tpu_custom_call.1} parent=1 // pred_region
      %58 = dma.done [#allocation6], 16
    $region25: #{tpu_custom_call.1} parent=1 // pred_fallthru
      _
    // Predicated region
    $region26: #{tpu_custom_call.1} parent=1 // pred_check
      _
    $region27: #{tpu_custom_call.1} parent=1 // pred_check_branch
      %60 = sbr.rel (0) target = $region29
    $region28: #{tpu_custom_call.1} parent=1 // pred_region
      %62 = dma.done [#allocation6], 2048
    $region29: #{tpu_custom_call.1} parent=1 // pred_fallthru
      _
    %v63 = vlaneseq
    %v64 = vand.u32 %v63, 127
    %v65 = vld [vmem:[#allocation2] sm:$0xff]
    %v66 = vcvt.f32.s32.ties.to.even %v65
    %vm67 = vcmp.lt.s32.totalorder %v64, 10
    %69 = vset.pattern.permute.xlu0 1
    %70 = vperm.xlu0 %69, %v65
    %v71 = vpop.permute.xlu0 %70
    %73 = vset.pattern.permute.xlu0 3
    %74 = vperm.xlu0 %73, %v65
    %v75 = vpop.permute.xlu0 %74
    %v77 = vsel %vm67, %v71, %v75
    %v78 = vld [vmem:[#allocation5] sm:$0x1]
    %v80 = vperm.slane %v78, 0
    %v82 = vmul.f32 %v80, %v77
    %v83 = vld [vmem:[%s2] sm:$0x1]
    %v85 = vperm.slane %v83, 0
    %v87 = vsub.f32 %v82, %v85
    %v88 = vmul.f32 %v87, %v87
    %v89 = vsub.f32 0.0, %v88
    %v90 = vmul.f32 %v89, 1.442695
    %v91 = vpow.pop %v90
    %vm92 = vcmp.lt.s32.totalorder %v64, 117
    %v93 = vadd.s32 %v66, 110
    %v94 = vadd.s32 %v66, 117
    %95 = vset.pattern.permute.xlu0 0
    %96 = vperm.xlu0 %95, %v93
    %v97 = vpop.permute.xlu0 %96
    %98 = vset.pattern.permute.xlu0 2
    %99 = vperm.xlu0 %98, %v94
    %v100 = vpop.permute.xlu0 %99
    %v101 = vsel %vm92, %v97, %v100
    %vm102 = vcmp.eq.s32.totalorder %v64, %v101
    %v103 = vsel %vm102, 1, 0
    %v104 = vcvt.s32.f32 %v103
    %vm105 = vcmp.lt.s32.totalorder %v64, 110
    %v106 = vsel %vm105, %v91, %v104
    %v107 = vld [vmem:[#allocation7] sm:$0xff]
    %v108 = vld [vmem:[#allocation7 + $0x8] sm:$0xff]
    %v109 = vld [vmem:[#allocation7 + $0x10] sm:$0xff]
    %v110 = vld [vmem:[#allocation7 + $0x18] sm:$0xff]
    %v111 = vld [vmem:[#allocation7 + $0x20] sm:$0xff]
    %v112 = vld [vmem:[#allocation7 + $0x28] sm:$0xff]
    %v113 = vld [vmem:[#allocation7 + $0x30] sm:$0xff]
    %v114 = vld [vmem:[#allocation7 + $0x38] sm:$0xff]
    %v115 = vld [vmem:[#allocation7 + $0x40] sm:$0xff]
    %v116 = vld [vmem:[#allocation7 + $0x48] sm:$0xff]
    %v117 = vld [vmem:[#allocation7 + $0x50] sm:$0xff]
    %v118 = vld [vmem:[#allocation7 + $0x58] sm:$0xff]
    %v119 = vld [vmem:[#allocation7 + $0x60] sm:$0xff]
    %v120 = vld [vmem:[#allocation7 + $0x68] sm:$0xff]
    %v121 = vld [vmem:[#allocation7 + $0x70] sm:$0xff]
    %v122 = vld [vmem:[#allocation7 + $0x78] sm:$0xff]
    %123 = vmatpush.msra.mxu0 %v122
    %124 = vmatpush.msra.mxu0 %v121
    %125 = vmatpush.msra.mxu0 %v120
    %126 = vmatpush.msra.mxu0 %v119
    %127 = vmatpush.msra.mxu0 %v118
    %128 = vmatpush.msra.mxu0 %v117
    %129 = vmatpush.msra.mxu0 %v116
    %130 = vmatpush.msra.mxu0 %v115
    %131 = vmatpush.msra.mxu0 %v114
    %132 = vmatpush.msra.mxu0 %v113
    %133 = vmatpush.msra.mxu0 %v112
    %134 = vmatpush.msra.mxu0 %v111
    %135 = vmatpush.msra.mxu0 %v110
    %136 = vmatpush.msra.mxu0 %v109
    %137 = vmatpush.msra.mxu0 %v108
    %138 = vmatpush.msra.mxu0 %v107
    %139 = vmatmul.f32.gmra.mxu0 %v106
    %v140 = vpop.f32.mrf.mxu0
    %v141 = vadd.f32 0.0, %v140
    %142 = vdwg.mxu0
    %143 = vst [vmem:[#allocation8] sm:$0xff] %v141
    // Predicated region
    $region30: #{tpu_custom_call.1} parent=1 // pred_check
      _
    $region31: #{tpu_custom_call.1} parent=1 // pred_check_branch
      %145 = sbr.rel (0) target = $region33
    $region32: #{tpu_custom_call.1} parent=1 // pred_region
      %147 = vsyncadd [#allocation4], 96
      %s148 = sshll.u32 [#allocation8], 4
      %s149 = int_to_ptr.vmem [resolvable:$true] %s148
      %s150 = sshll.u32 %s4, 4
      %s151 = int_to_ptr.hbm [resolvable:$true] %s150
      %156 = dma.vmem_to_hbm [thread:$0]  %s149, 32, %s151, [#allocation4], 32, 32, 2
    $region33: #{tpu_custom_call.1} parent=1 // pred_fallthru
      _
    // Predicated region
    $region34: #{tpu_custom_call.1} parent=1 // pred_check
      _
    $region35: #{tpu_custom_call.1} parent=1 // pred_check_branch
      %158 = sbr.rel (0) target = $region37
    $region36: #{tpu_custom_call.1} parent=1 // pred_region
      %160 = dma.done [#allocation4], 128
    $region37: #{tpu_custom_call.1} parent=1 // pred_fallthru
      _
    %161 = vsyncpa [#allocation3], 1
    %162 = vsyncpa [#allocation6], 1
    %163 = vsyncpa [#allocation4], 1

</llo_original>
